<compile_context>
chip_gen: v7x
topology: tpu7x:2x2x1
jax: 0.10.0
libtpu: 0.0.40
codegen_flags: <defaults>
</compile_context>

<pallas_src>
import functools

import jax
import jax.numpy as jnp
from jax.experimental import pallas as pl
from jax.experimental.pallas import tpu as pltpu


def _patch_embed_kernel(p_ref, w_ref, t_ref, o_ref):
    # p_ref: (1, N+1, K)  bf16 patch matrix for this batch element; row 0 is zeros.
    # w_ref: (K, tE)      bf16 projection-weight tile (VMEM-resident across batch).
    # t_ref: (N+1, tE)    bf16 additive table: row 0 = cls + pos[0],
    #                     rows 1..N = conv bias + pos[1:].
    # o_ref: (1, N+1, tE) f32 output tile.
    acc = jnp.dot(p_ref[0], w_ref[...],
                  preferred_element_type=jnp.float32)          # MXU, f32 accumulate
    o_ref[0, :, :] = (acc + t_ref[...].astype(jnp.float32)).astype(o_ref.dtype)


def _block_bytes(n_rows, K, tE):
    """Per-grid-step VMEM bytes for one buffer of each operand."""
    patch = n_rows * K * 2          # bf16 patches
    w = K * tE * 2                  # bf16 weight tile
    table = n_rows * tE * 2         # bf16 additive table tile
    out = n_rows * tE * 4           # f32 output tile
    return patch + w + table + out


def _pick_e_tile(Ep, n_rows, K, budget_bytes=16 * 1024 * 1024):
    """Largest multiple-of-128 tile dividing Ep whose double-buffered working
    set fits the budget (full Ep preferred so the grid collapses to (1, B))."""
    cands = [t for t in range(Ep, 0, -128) if Ep % t == 0]
    for t in cands:
        if 2 * _block_bytes(n_rows, K, t) <= budget_bytes:
            return t
    return cands[-1] if cands else Ep


@functools.partial(jax.jit, static_argnames=("patch_size",))
def patch_embedding(x, conv_w, conv_b, cls_token, positions, patch_size):
    """x: (B, C, H, W) f32. Returns (B, N+1, E) f32, matching the PyTorch module."""
    B, C, H, W = x.shape
    P = patch_size
    assert H % P == 0 and W % P == 0, "spatial dims must be divisible by patch_size"
    Hp, Wp = H // P, W // P
    N = Hp * Wp
    E = conv_w.shape[0]
    K = C * P * P
    assert conv_w.shape == (E, C, P, P), conv_w.shape
    assert positions.shape == (N + 1, E), positions.shape
    assert cls_token.shape[-1] == E, cls_token.shape

    # Pad E up to a lane-dense width so the output store is never masked.
    Ep = max(128, ((E + 127) // 128) * 128)
    n_rows = N + 1
    tE = _pick_e_tile(Ep, n_rows, K)

    # --- glue: unfold NCHW image into a (B, N+1, K) bf16 patch matrix with a
    #     zero row prepended for the cls token; (c, kh, kw) flattening order
    #     matches nn.Conv2d's weight layout.
    xb = x.astype(jnp.bfloat16)
    patches = xb.reshape(B, C, Hp, P, Wp, P)
    patches = patches.transpose(0, 2, 4, 1, 3, 5)              # (B, Hp, Wp, C, P, P)
    patches = patches.reshape(B, N, K)
    patches = jnp.pad(patches, ((0, 0), (1, 0), (0, 0)))       # (B, N+1, K), row 0 = 0

    # conv weight (E, C, P, P) -> (K, E); merged additive table (N+1, E):
    #   row 0 = cls + pos[0], rows 1.. = conv bias + pos[1:].
    w_mat = conv_w.reshape(E, K).T.astype(jnp.float32)          # (K, E)
    cls_row = cls_token.reshape(1, E).astype(jnp.float32) + positions[0:1].astype(jnp.float32)
    body = positions[1:].astype(jnp.float32) + conv_b.reshape(1, E).astype(jnp.float32)
    table = jnp.concatenate([cls_row, body], axis=0)            # (N+1, E)
    if Ep != E:
        w_mat = jnp.pad(w_mat, ((0, 0), (0, Ep - E)))
        table = jnp.pad(table, ((0, 0), (0, Ep - E)))
    w_mat = w_mat.astype(jnp.bfloat16)
    table = table.astype(jnp.bfloat16)

    # VMEM budget: 2 buffers per operand (pipelining), then 2x headroom,
    # clamped to 32 MiB (safe on v5e/v6e/v7x).
    need = 2 * _block_bytes(n_rows, K, tE)
    vmem_limit = int(min(max(2 * need, 4 * 1024 * 1024), 32 * 1024 * 1024))

    out = pl.pallas_call(
        _patch_embed_kernel,
        out_shape=jax.ShapeDtypeStruct((B, n_rows, Ep), jnp.float32),
        grid_spec=pltpu.PrefetchScalarGridSpec(
            num_scalar_prefetch=0,
            # E-tile axis OUTER, batch INNER: W / table blocks are constant
            # across the inner batch loop -> VMEM-resident, no re-fetch.
            grid=(Ep // tE, B),
            in_specs=[
                pl.BlockSpec((1, n_rows, K), lambda j, b: (b, 0, 0)),
                pl.BlockSpec((K, tE), lambda j, b: (0, j)),
                pl.BlockSpec((n_rows, tE), lambda j, b: (0, j)),
            ],
            out_specs=pl.BlockSpec((1, n_rows, tE), lambda j, b: (b, 0, j)),
        ),
        compiler_params=pltpu.CompilerParams(
            dimension_semantics=("parallel", "parallel"),
            vmem_limit_bytes=vmem_limit,
        ),
    )(patches, w_mat, table)

    if Ep != E:
        out = out[:, :, :E]
    return out


if __name__ == "__main__":
    # Small shapes consistent with the module: batch=2, channels=4,
    # spatial=16, patch=4 -> 16 patch tokens, emb=32.
    B, C, H, W = 2, 4, 16, 16
    P = 4
    E = 32
    N = (H // P) * (W // P)

    key = jax.random.PRNGKey(0)
    kx, kw, kb, kc, kp = jax.random.split(key, 5)

    x = jax.random.normal(kx, (B, C, H, W), dtype=jnp.float32)
    # Module __init__ zero-inits cls_token/positions; use random values here
    # for a non-trivial numerical check.
    conv_w = jax.random.normal(kw, (E, C, P, P), dtype=jnp.float32) * 0.05
    conv_b = jax.random.normal(kb, (E,), dtype=jnp.float32) * 0.05
    cls_token = jax.random.normal(kc, (1, 1, E), dtype=jnp.float32) * 0.02
    positions = jax.random.normal(kp, (N + 1, E), dtype=jnp.float32) * 0.02

    out = patch_embedding(x, conv_w, conv_b, cls_token, positions, P)
    out = jax.block_until_ready(out)
    assert out.shape == (B, N + 1, E), out.shape

    # Pure-JAX f32 reference (same math as nn.Conv2d with stride=kernel=P).
    patches_ref = x.reshape(B, C, H // P, P, W // P, P)
    patches_ref = patches_ref.transpose(0, 2, 4, 1, 3, 5).reshape(B, N, C * P * P)
    ref = jnp.einsum("bnk,ek->bne", patches_ref, conv_w.reshape(E, -1)) + conv_b
    ref = jnp.concatenate([jnp.broadcast_to(cls_token, (B, 1, E)), ref], axis=1)
    ref = ref + positions[None, :, :]

    # bf16 matmul inputs / bf16 additive table (f32 accumulation & add)
    # -> relaxed tolerance vs the f32 reference.
    max_err = float(jnp.abs(out - ref).max())
    assert jnp.allclose(out, ref, atol=2e-2, rtol=2e-2), max_err
    print("KERNEL_OK")
</pallas_src>

<mosaic_0001>
module attributes {stable_mosaic.version = 11 : i64} {
  func.func @_patch_embed_kernel(%arg0: i32, %arg1: i32, %arg2: memref<1x17x64xbf16, #tpu.memory_space<vmem>>, %arg3: memref<64x128xbf16, #tpu.memory_space<vmem>>, %arg4: memref<17x128xbf16, #tpu.memory_space<vmem>>, %arg5: memref<1x17x128xf32, #tpu.memory_space<vmem>>) attributes {dimension_semantics = [#tpu.dimension_semantics<parallel>, #tpu.dimension_semantics<parallel>], iteration_bounds = array<i64: 1, 2>, scalar_prefetch = 0 : i64, scratch_operands = 0 : i64, tpu.core_type = #tpu.core_type<tc>, window_params = [{transform_indices = @transform_0, window_bounds = array<i64: 1, 17, 64>}, {transform_indices = @transform_1, window_bounds = array<i64: 64, 128>}, {transform_indices = @transform_2, window_bounds = array<i64: 17, 128>}, {transform_indices = @transform_3, window_bounds = array<i64: 1, 17, 128>}]} {
    %c0 = arith.constant 0 : index
    %c0_0 = arith.constant 0 : index
    %c0_1 = arith.constant 0 : index
    %0 = vector.load %arg2[%c0, %c0_0, %c0_1] : memref<1x17x64xbf16, #tpu.memory_space<vmem>>, vector<1x17x64xbf16>
    %1 = vector.shape_cast %0 : vector<1x17x64xbf16> to vector<17x64xbf16>
    %c0_2 = arith.constant 0 : index
    %c0_3 = arith.constant 0 : index
    %2 = vector.load %arg3[%c0_2, %c0_3] : memref<64x128xbf16, #tpu.memory_space<vmem>>, vector<64x128xbf16>
    %cst = arith.constant dense<0.000000e+00> : vector<17x128xf32>
    %3 = tpu.matmul %1, %2, %cst {dimension_numbers = #tpu.dot_dimension_numbers<[1], [0], [0], [1], [0, 0, 1, 1], [], []>} : vector<17x64xbf16>, vector<64x128xbf16>, vector<17x128xf32> -> vector<17x128xf32>
    %c0_4 = arith.constant 0 : index
    %c0_5 = arith.constant 0 : index
    %4 = vector.load %arg4[%c0_4, %c0_5] : memref<17x128xbf16, #tpu.memory_space<vmem>>, vector<17x128xbf16>
    %5 = arith.extf %4 : vector<17x128xbf16> to vector<17x128xf32>
    %6 = arith.addf %3, %5 : vector<17x128xf32>
    %c0_6 = arith.constant 0 : index
    %c0_7 = arith.constant 0 : index
    %c0_8 = arith.constant 0 : index
    %7 = vector.load %arg5[%c0_6, %c0_7, %c0_8] : memref<1x17x128xf32, #tpu.memory_space<vmem>>, vector<1x17x128xf32>
    %8 = vector.shape_cast %7 : vector<1x17x128xf32> to vector<17x128xf32>
    %9 = vector.shape_cast %6 : vector<17x128xf32> to vector<1x17x128xf32>
    tpu.vector_store %arg5[%c0_6, %c0_7, %c0_8], %9 {strides = array<i32>} : memref<1x17x128xf32, #tpu.memory_space<vmem>>, vector<1x17x128xf32>,
    return
  }
  func.func @transform_0(%arg0: i32, %arg1: i32) -> (i32, i32, i32) {
    %c0_i32 = arith.constant 0 : i32
    %c0_i32_0 = arith.constant 0 : i32
    %c0_i32_1 = arith.constant 0 : i32
    return %arg1, %c0_i32, %c0_i32_0 : i32, i32, i32
  }
  func.func @transform_1(%arg0: i32, %arg1: i32) -> (i32, i32) {
    %c0_i32 = arith.constant 0 : i32
    %c0_i32_0 = arith.constant 0 : i32
    return %c0_i32, %arg0 : i32, i32
  }
  func.func @transform_2(%arg0: i32, %arg1: i32) -> (i32, i32) {
    %c0_i32 = arith.constant 0 : i32
    %c0_i32_0 = arith.constant 0 : i32
    return %c0_i32, %arg0 : i32, i32
  }
  func.func @transform_3(%arg0: i32, %arg1: i32) -> (i32, i32, i32) {
    %c0_i32 = arith.constant 0 : i32
    %c0_i32_0 = arith.constant 0 : i32
    return %arg1, %c0_i32, %arg0 : i32, i32, i32
  }
}

</mosaic_0001>

<llo_original>
// kernel: patch_embedding.1
$region0: #{patch_embedding.1}
  #allocation0 [shape = 'u32[]', space=smem, size = 0x4, offset = 0x4, fixed_abs, tag = 'smem constant byte address 0x4 - core index']
  #allocation1 [shape = 'u32[144,128]{1,0:T(1,128)}', space=vmem, size = 0x12000, scoped, tag = 'internal scratch']
  %s0 = inlined_call_operand.vmem [shape: bf16[2,17,64], index: 0, kind: input, shape index: {}]
  %s1 = inlined_call_operand.vmem [shape: bf16[64,128], index: 1, kind: input, shape index: {}]
  %s2 = inlined_call_operand.vmem [shape: bf16[17,128], index: 2, kind: input, shape index: {}]
  %s3 = inlined_call_operand.vmem [shape: f32[2,17,128], index: 3, kind: output, shape index: {}]
  %s4 = sld [smem:[#allocation0]]
  $region45: #{patch_embedding.1} parent=0
    _
  %s6 = ssub.s32 1, %s4
  %s7 = scalar_select 0, %s6, %s4
  loop: start=0, step=1, limit=4
  $region2: #{patch_embedding.1} parent=0 // loop_pre_header
    _
  $region3: #{patch_embedding.1} parent=0 // loop_header
    %s9 = sphi 0, %s13
    %p10 = scmp.ge.s32.totalorder %s9, 4
    %s16 = sphi 0, %s28
    %s17 = sphi 0, %s24
    %s18 = sphi 0, %s16
    %s19 = sphi 0, %s17
    %s20 = sphi 0, %s18
    %s21 = sphi 0, %s19
    %s31 = sphi 0, %s33
    %s34 = sphi 0, %s31
    %s35 = sphi 0, %s34
    %s51 = sphi 0, %s35
    %s57 = sphi 0, %s59
    %s60 = sphi 0, %s57
    %s61 = sphi 0, %s60
    %s77 = sphi 0, %s61
    %s83 = sphi 0, %s85
    %s86 = sphi 0, %s83
    %s87 = sphi 0, %s86
    %s103 = sphi 0, %s87
    %s111 = sphi 0, %s113
    %s114 = sphi 0, %s111
    %s115 = sphi 0, %s114
    %s131 = sphi 0, %s115
  $region4: #{patch_embedding.1} parent=0 // loop_header_branch
    %12 = sbr.rel (%p10) target = $region8
  $region5: #{patch_embedding.1} parent=0 // loop_body
    %s14 = ssub.s32 %s9, 1
    %s15 = ssub.s32 %s9, 2
    %s22 = sadd.s32 1, %s17
    %p23 = scmp.ge.s32.totalorder %s22, 2
    %s24 = scalar_select %p23, 0, %s22
    %s25 = sadd.s32 1, %s16
    %s26 = scalar_select %p23, %s25, %s16
    %p27 = scmp.ge.s32.totalorder %s26, 1
    %s28 = scalar_select %p27, 0, %s26
    %s29 = ssub.s32 %s17, %s24
    %p30 = scmp.eq.s32.totalorder %s29, 0
    %s32 = sadd.s32 %s31, 1
    %s33 = scalar_select %p30, %s31, %s32
    %p36 = pneg %p30
    %p37 = scmp.eq.s32.totalorder %s9, 1
    %p38 = por %p36, %p37
    %p39 = scmp.ne.s32.totalorder %s31, %s34
    %p40 = scmp.eq.s32.totalorder %s9, 0
    %p41 = por %p39, %p40
    %p42 = scmp.ne.s32.totalorder %s31, %s34
    %p43 = scmp.eq.s32.totalorder %s14, 1
    %p44 = por %p42, %p43
    %p45 = scmp.ne.s32.totalorder %s34, %s35
    %p46 = scmp.eq.s32.totalorder %s14, 0
    %p47 = por %p45, %p46
    %p48 = scmp.ne.s32.totalorder %s34, %s35
    %p49 = scmp.eq.s32.totalorder %s15, 1
    %p50 = por %p48, %p49
    %p52 = scmp.ne.s32.totalorder %s35, %s51
    %p53 = scmp.eq.s32.totalorder %s15, 0
    %p54 = por %p52, %p53
    %s55 = ssub.s32 %s16, %s28
    %p56 = scmp.eq.s32.totalorder %s55, 0
    %s58 = sadd.s32 %s57, 1
    %s59 = scalar_select %p56, %s57, %s58
    %p62 = pneg %p56
    %p63 = scmp.eq.s32.totalorder %s9, 1
    %p64 = por %p62, %p63
    %p65 = scmp.ne.s32.totalorder %s57, %s60
    %p66 = scmp.eq.s32.totalorder %s9, 0
    %p67 = por %p65, %p66
    %p68 = scmp.ne.s32.totalorder %s57, %s60
    %p69 = scmp.eq.s32.totalorder %s14, 1
    %p70 = por %p68, %p69
    %p71 = scmp.ne.s32.totalorder %s60, %s61
    %p72 = scmp.eq.s32.totalorder %s14, 0
    %p73 = por %p71, %p72
    %p74 = scmp.ne.s32.totalorder %s60, %s61
    %p75 = scmp.eq.s32.totalorder %s15, 1
    %p76 = por %p74, %p75
    %p78 = scmp.ne.s32.totalorder %s61, %s77
    %p79 = scmp.eq.s32.totalorder %s15, 0
    %p80 = por %p78, %p79
    %s81 = ssub.s32 %s16, %s28
    %p82 = scmp.eq.s32.totalorder %s81, 0
    %s84 = sadd.s32 %s83, 1
    %s85 = scalar_select %p82, %s83, %s84
    %p88 = pneg %p82
    %p89 = scmp.eq.s32.totalorder %s9, 1
    %p90 = por %p88, %p89
    %p91 = scmp.ne.s32.totalorder %s83, %s86
    %p92 = scmp.eq.s32.totalorder %s9, 0
    %p93 = por %p91, %p92
    %p94 = scmp.ne.s32.totalorder %s83, %s86
    %p95 = scmp.eq.s32.totalorder %s14, 1
    %p96 = por %p94, %p95
    %p97 = scmp.ne.s32.totalorder %s86, %s87
    %p98 = scmp.eq.s32.totalorder %s14, 0
    %p99 = por %p97, %p98
    %p100 = scmp.ne.s32.totalorder %s86, %s87
    %p101 = scmp.eq.s32.totalorder %s15, 1
    %p102 = por %p100, %p101
    %p104 = scmp.ne.s32.totalorder %s87, %s103
    %p105 = scmp.eq.s32.totalorder %s15, 0
    %p106 = por %p104, %p105
    %s107 = ssub.s32 %s17, %s24
    %s108 = ssub.s32 %s16, %s28
    %s109 = sor.u32 %s107, %s108
    %p110 = scmp.eq.s32.totalorder %s109, 0
    %s112 = sadd.s32 %s111, 1
    %s113 = scalar_select %p110, %s111, %s112
    %p116 = pneg %p110
    %p117 = scmp.eq.s32.totalorder %s9, 1
    %p118 = por %p116, %p117
    %p119 = scmp.ne.s32.totalorder %s111, %s114
    %p120 = scmp.eq.s32.totalorder %s9, 0
    %p121 = por %p119, %p120
    %p122 = scmp.ne.s32.totalorder %s111, %s114
    %p123 = scmp.eq.s32.totalorder %s14, 1
    %p124 = por %p122, %p123
    %p125 = scmp.ne.s32.totalorder %s114, %s115
    %p126 = scmp.eq.s32.totalorder %s14, 0
    %p127 = por %p125, %p126
    %p128 = scmp.ne.s32.totalorder %s114, %s115
    %p129 = scmp.eq.s32.totalorder %s15, 1
    %p130 = por %p128, %p129
    %p132 = scmp.ne.s32.totalorder %s115, %s131
    %p133 = scmp.eq.s32.totalorder %s15, 0
    %p134 = por %p132, %p133
    %p135 = scmp.le.s32.totalorder 1, %s9
    %p136 = scmp.lt.s32.totalorder %s9, 3
    %p137 = pnand %p135, %p136
    %p138 = pneg %p137
    // Predicated region
    $region9: #{patch_embedding.1} parent=5 // pred_check
      _
    $region10: #{patch_embedding.1} parent=5 // pred_check_branch
      %140 = sbr.rel (%p137) target = $region12
    $region11: #{patch_embedding.1} parent=5 // pred_region
      %s141 = ssub.s32 %s9, 1
      // Predicated region
      $region13: #{patch_embedding.1} parent=11 // pred_check
        %p142 = pneg %p73
      $region14: #{patch_embedding.1} parent=11 // pred_check_branch
        %144 = sbr.rel (%p142) target = $region16
      $region15: #{patch_embedding.1} parent=11 // pred_region
        %p145 = scmp.lt.s32.totalorder %s18, 0
        %s146 = scalar_select %p145, %s18, 0
        %s147 = smul.addr %s146, 4
        %s148 = scalar_lea.vmem %s1, %s147
      $region16: #{patch_embedding.1} parent=11 // pred_fallthru
        _
      // Predicated region
      $region17: #{patch_embedding.1} parent=11 // pred_check
        %p149 = pneg %p99
      $region18: #{patch_embedding.1} parent=11 // pred_check_branch
        %151 = sbr.rel (%p149) target = $region20
      $region19: #{patch_embedding.1} parent=11 // pred_region
        %p152 = scmp.lt.s32.totalorder %s18, 0
        %s153 = scalar_select %p152, %s18, 0
        %s154 = smul.addr %s153, 4
        %s155 = scalar_lea.vmem %s2, %s154
      $region20: #{patch_embedding.1} parent=11 // pred_fallthru
        _
    $region12: #{patch_embedding.1} parent=5 // pred_fallthru
      _
    %p156 = scmp.lt.s32.totalorder %s9, 2
    // Predicated region
    $region21: #{patch_embedding.1} parent=5 // pred_check
      %p157 = pneg %p156
    $region22: #{patch_embedding.1} parent=5 // pred_check_branch
      %159 = sbr.rel (%p157) target = $region24
    $region23: #{patch_embedding.1} parent=5 // pred_region
      // Predicated region
      $region25: #{patch_embedding.1} parent=23 // pred_check
        %p160 = pneg %p41
      $region26: #{patch_embedding.1} parent=23 // pred_check_branch
        %162 = sbr.rel (%p160) target = $region28
      $region27: #{patch_embedding.1} parent=23 // pred_region
        %p163 = scmp.lt.s32.totalorder %s17, 1
        %s164 = scalar_select %p163, %s17, 1
        %s165 = smul.addr %s164, 3
        %s166 = smul.addr %s165, 4
        %s167 = scalar_lea.vmem %s0, %s166
      $region28: #{patch_embedding.1} parent=23 // pred_fallthru
        _
    $region24: #{patch_embedding.1} parent=5 // pred_fallthru
      _
    %p168 = scmp.le.s32.totalorder 1, %s9
    %p169 = scmp.lt.s32.totalorder %s9, 3
    %p170 = pnand %p168, %p169
    %p171 = pneg %p170
    // Predicated region
    $region29: #{patch_embedding.1} parent=5 // pred_check
      _
    $region30: #{patch_embedding.1} parent=5 // pred_check_branch
      %173 = sbr.rel (%p170) target = $region32
    $region31: #{patch_embedding.1} parent=5 // pred_region
      %s174 = ssub.s32 %s9, 1
      %p175 = scmp.lt.s32.totalorder %s19, 1
      %s176 = scalar_select %p175, %s19, 1
      %s177 = smul.addr %s176, 3
      %s178 = smul.addr %s177, 4
      %s179 = scalar_lea.vmem %s0, %s178
      %p180 = pneg %p47
      %p181 = pneg %p44
      %p182 = scmp.lt.s32.totalorder %s18, 0
      %s183 = scalar_select %p182, %s18, 0
      %s184 = smul.addr %s183, 4
      %s185 = scalar_lea.vmem %s1, %s184
      %p186 = pneg %p73
      %p187 = pneg %p70
      %p188 = scmp.lt.s32.totalorder %s18, 0
      %s189 = scalar_select %p188, %s18, 0
      %s190 = smul.addr %s189, 4
      %s191 = scalar_lea.vmem %s2, %s190
      %p192 = pneg %p99
      %p193 = pneg %p96
      %p194 = pneg %p127
      %p195 = pneg %p124
      %p196 = scmp.lt.s32.totalorder %s19, 1
      %s197 = scalar_select %p196, %s19, 1
      %p198 = scmp.lt.s32.totalorder %s18, 0
      %s199 = scalar_select %p198, %s18, 0
      %s200 = smul.addr %s197, 3
      %s201 = sadd.s32 %s199, %s200
      %s202 = smul.addr %s201, 8
      %s203 = scalar_lea.vmem %s3, %s202
      %p204 = scmp.lt.s32.totalorder %s19, 1
      %s205 = scalar_select %p204, %s19, 1
      %s206 = smul.addr %s205, 3
      %s207 = smul.addr %s206, 4
      %s208 = scalar_lea.vmem %s0, %s207
      %p209 = scmp.lt.s32.totalorder %s18, 0
      %s210 = scalar_select %p209, %s18, 0
      %s211 = smul.addr %s210, 4
      %s212 = scalar_lea.vmem %s1, %s211
      %p213 = scmp.lt.s32.totalorder %s18, 0
      %s214 = scalar_select %p213, %s18, 0
      %s215 = smul.addr %s214, 4
      %s216 = scalar_lea.vmem %s2, %s215
      %p217 = scmp.lt.s32.totalorder %s19, 1
      %s218 = scalar_select %p217, %s19, 1
      %p219 = scmp.lt.s32.totalorder %s18, 0
      %s220 = scalar_select %p219, %s18, 0
      %s221 = smul.addr %s218, 3
      %s222 = sadd.s32 %s220, %s221
      %s223 = smul.addr %s222, 8
      %s224 = scalar_lea.vmem %s3, %s223
      %v226 = vld [vmem:[%s208] sm:$0xf]
      %v227 = vld [vmem:[%s208 + $0x4] sm:$0xf]
      %v228 = vld [vmem:[%s208 + $0x8] sm:$0x1]
      %v229 = vld [vmem:[%s212] sm:$0xf]
      %v230 = vld [vmem:[%s212 + $0x4] sm:$0xf]
      %v231 = vld [vmem:[%s212 + $0x8] sm:$0xf]
      %v232 = vld [vmem:[%s212 + $0xc] sm:$0xf]
      %v233 = vld [vmem:[%s212 + $0x10] sm:$0xf]
      %v234 = vld [vmem:[%s212 + $0x14] sm:$0xf]
      %v235 = vld [vmem:[%s212 + $0x18] sm:$0xf]
      %v236 = vld [vmem:[%s212 + $0x1c] sm:$0xf]
      %v237 = vld [vmem:[%s216] sm:$0xf]
      %v238 = vld [vmem:[%s216 + $0x4] sm:$0xf]
      %v239 = vld [vmem:[%s216 + $0x8] sm:$0x1]
      %v240 = vunpack.c.l.bf16 %v237
      %v241 = vunpack.c.l.bf16 %v238
      %v242 = vunpack.c.l.bf16 %v239
      %v246 = vunpack.c.l.b16 %v226
      %v247 = vunpack.c.l.b16 %v227
      %v248 = vunpack.c.l.b16 %v228
      %v249 = vpack.c.b16 %v247, %v246
      %v250 = vpack.c.b16 %v248, %v248
      %v259 = vunpack.c.l.b16 %v229
      %v260 = vunpack.c.l.b16 %v230
      %v261 = vunpack.c.l.b16 %v231
      %v262 = vunpack.c.l.b16 %v232
      %v263 = vunpack.c.l.b16 %v233
      %v264 = vunpack.c.l.b16 %v234
      %v265 = vunpack.c.l.b16 %v235
      %v266 = vunpack.c.l.b16 %v236
      %v267 = vpack.c.b16 %v260, %v259
      %v268 = vpack.c.b16 %v262, %v261
      %v269 = vpack.c.b16 %v264, %v263
      %v270 = vpack.c.b16 %v266, %v265
      %vm275 = vcmask 523264
      %v277 = vsel %vm275, %v249, 0
      %v280 = vsel %vm275, %v250, 0
      %282 = vmatprep.subr.bf16.mxu0 0
      %283 = vmatpush1.bf16.msra.mxu0 %v267
      %284 = vmatprep.subr.bf16.mxu0 0
      %285 = vmatpush1.bf16.msra.mxu0 %v268
      %286 = vmatprep.subr.bf16.mxu0 0
      %287 = vmatpush1.bf16.msra.mxu0 %v269
      %288 = vmatprep.subr.bf16.mxu0 0
      %289 = vmatpush1.bf16.msra.mxu0 %v270
      %290 = vmatprep.subr.bf16.mxu0 0
      %291 = vmatpush1.bf16.msra.mxu0 0
      %292 = vmatprep.subr.bf16.mxu0 0
      %293 = vmatpush1.bf16.msra.mxu0 0
      %294 = vmatprep.subr.bf16.mxu0 0
      %295 = vmatpush1.bf16.msra.mxu0 0
      %296 = vmatprep.subr.bf16.mxu0 0
      %297 = vmatpush1.bf16.msra.mxu0 0
      %298 = vmatprep.subr.bf16.mxu0 0
      %299 = vmatpush1.bf16.msra.mxu0 0
      %300 = vmatprep.subr.bf16.mxu0 0
      %301 = vmatpush1.bf16.msra.mxu0 0
      %302 = vmatprep.subr.bf16.mxu0 0
      %303 = vmatpush1.bf16.msra.mxu0 0
      %304 = vmatprep.subr.bf16.mxu0 0
      %305 = vmatpush1.bf16.msra.mxu0 0
      %306 = vmatprep.subr.bf16.mxu0 0
      %307 = vmatpush1.bf16.msra.mxu0 0
      %308 = vmatprep.subr.bf16.mxu0 0
      %309 = vmatpush1.bf16.msra.mxu0 0
      %310 = vmatprep.subr.bf16.mxu0 0
      %311 = vmatpush1.bf16.msra.mxu0 0
      %312 = vmatprep.subr.bf16.mxu0 0
      %313 = vmatpush1.bf16.msra.mxu0 0
      %314 = vmatprep.mubr.bf16.mxu0 0
      %315 = vmatmul.mubr.bf16.gmra.mrb[0].mxu0 %v277
      %v316 = vpop.f32.mrb[0].mxu0
      %v317 = vadd.f32 %v240, %v316
      %v318 = vpop.f32.mrb[0].mxu0
      %v319 = vpop.f32.mrb[0].mxu0
      %v320 = vadd.f32 %v241, %v319
      %v321 = vpop.f32.mrb[0].mxu0
      %322 = vmatprep.mubr.bf16.mxu0 0
      %323 = vmatmul.mubr.bf16.gmra.mrb[0].mxu0 %v280
      %v324 = vpop.f32.mrb[0].mxu0
      %v325 = vadd.f32 %v242, %v324
      %v326 = vpop.f32.mrb[0].mxu0
      %v327 = vpop.f32.mrb[0].mxu0
      %v328 = vpop.f32.mrb[0].mxu0
      %329 = vdwg.mxu0
      %330 = vst [vmem:[%s224] sm:$0xff] %v317
      %331 = vst [vmem:[%s224 + $0x8] sm:$0xff] %v320
      %332 = vst [vmem:[%s224 + $0x10] sm:$0x1] %v325
      %p333 = scmp.lt.s32.totalorder %s19, 1
      %s334 = scalar_select %p333, %s19, 1
      %p335 = scmp.lt.s32.totalorder %s18, 0
      %s336 = scalar_select %p335, %s18, 0
      %s337 = smul.addr %s334, 3
      %s338 = sadd.s32 %s336, %s337
      %s339 = smul.addr %s338, 8
      %s340 = scalar_lea.vmem %s3, %s339
      // Predicated region
      $region33: #{patch_embedding.1} parent=31 // pred_check
        %p341 = pneg %p124
      $region34: #{patch_embedding.1} parent=31 // pred_check_branch
        %343 = sbr.rel (%p341) target = $region36
      $region35: #{patch_embedding.1} parent=31 // pred_region
        _
      $region36: #{patch_embedding.1} parent=31 // pred_fallthru
        _
    $region32: #{patch_embedding.1} parent=5 // pred_fallthru
      _
    %p344 = scmp.le.s32.totalorder 2, %s9
    // Predicated region
    $region37: #{patch_embedding.1} parent=5 // pred_check
      %p345 = pneg %p344
    $region38: #{patch_embedding.1} parent=5 // pred_check_branch
      %347 = sbr.rel (%p345) target = $region40
    $region39: #{patch_embedding.1} parent=5 // pred_region
      %s348 = ssub.s32 %s9, 2
      // Predicated region
      $region41: #{patch_embedding.1} parent=39 // pred_check
        %p349 = pneg %p130
      $region42: #{patch_embedding.1} parent=39 // pred_check_branch
        %351 = sbr.rel (%p349) target = $region44
      $region43: #{patch_embedding.1} parent=39 // pred_region
        %p352 = scmp.lt.s32.totalorder %s21, 1
        %s353 = scalar_select %p352, %s21, 1
        %p354 = scmp.lt.s32.totalorder %s20, 0
        %s355 = scalar_select %p354, %s20, 0
        %s356 = smul.addr %s353, 3
        %s357 = sadd.s32 %s355, %s356
        %s358 = smul.addr %s357, 8
        %s359 = scalar_lea.vmem %s3, %s358
      $region44: #{patch_embedding.1} parent=39 // pred_fallthru
        _
    $region40: #{patch_embedding.1} parent=5 // pred_fallthru
      _
  $region6: #{patch_embedding.1} parent=0 // loop_footer
    %s13 = sadd.s32 1, %s9
  $region7: #{patch_embedding.1} parent=0 // loop_footer_branch
    %8 = sbr.rel target = $region3
  $region8: #{patch_embedding.1} parent=0 // loop_exit
    _

</llo_original>
